<compile_context>
chip_gen: v5e
topology: v5e:2x2
jax: 0.10.0
libtpu: 0.0.40
codegen_flags: <defaults>
</compile_context>

<pallas_src>
import jax
import jax.numpy as jnp
from jax.experimental import pallas as pl
from jax.experimental.pallas import tpu as pltpu


def _edge_net_kernel(idx_ref, pcr_ref, b1_ref, w2_ref, b2_ref, o_ref):
    # idx_ref: [2, tile_e] int32  (row 0: col ids in [0, N); row 1: row ids pre-offset by +N)
    # pcr_ref: [C*H, 2N] f32      (cols 0..N-1: W1[:, :d]@m ; cols N..2N-1: W1[:, d:]@m)
    # b1_ref:  [C*H, 1]   w2_ref: [C, C*H] block-diagonal   b2_ref: [C, 1]   o_ref: [C, tile_e]
    two_n = pcr_ref.shape[1]
    tile_e = idx_ref.shape[1]

    idx = idx_ref[...]
    ids = jax.lax.broadcasted_iota(jnp.int32, (two_n, tile_e), 0)
    # Single fused one-hot covering both the col half (rows 0..N-1) and the row half
    # (rows N..2N-1); the two matches can never collide, so OR == exact sum.
    oh = jnp.logical_or(ids == idx[0:1, :], ids == idx[1:2, :]).astype(jnp.float32)

    # Fused gather + concat + first (class-shared) Linear as ONE MXU matmul.
    pre = jnp.dot(pcr_ref[...], oh, preferred_element_type=jnp.float32) + b1_ref[...]
    h = jnp.tanh(pre)                                             # [C*H, tile_e]  (EUP-bound)

    # Second (class-shared) Linear lifted to a block-diagonal [C, C*H] weight.
    s = jnp.tanh(jnp.dot(w2_ref[...], h, preferred_element_type=jnp.float32)
                 + b2_ref[...])                                   # [C, tile_e]

    # Softmax over classes (sublane axis). tanh bounds s to [-1, 1] -> no max-subtraction.
    # Exact divide (denominator is only [1, tile_e]) keeps probabilities f32-exact.
    e = jnp.exp(s)
    o_ref[...] = e / jnp.sum(e, axis=0, keepdims=True)


def multiclass_edge_network_pallas(m, edge_index, W1, b1, W2, b2, *,
                                   tile_e=8192, class_major_output=False):
    """m: [N, C, input_dim]; edge_index: [2, E] int; W1: [H, 2*input_dim]; b1: [H];
    W2: [1, H]; b2: [1].
    Returns softmax-over-classes scores of shape [E, C, 1] (torch layout), or [C, E] if
    class_major_output=True (avoids the trailing transpose when the consumer accepts it)."""
    N, C, d = m.shape
    H = W1.shape[0]
    CH = C * H

    row = edge_index[0].astype(jnp.int32)
    col = edge_index[1].astype(jnp.int32)
    E = int(row.shape[0])

    f32 = jnp.float32
    W1 = W1.astype(f32); b1 = b1.astype(f32)
    W2 = W2.astype(f32); b2 = b2.astype(f32)
    mf = m.astype(f32)

    # Fold the class-shared first Linear into a single per-node table ("transform, then gather"):
    #   W1 @ cat(m[col], m[row]) == W1[:, :d] @ m[col] + W1[:, d:] @ m[row]
    PC = jnp.einsum("ncf,hf->chn", mf, W1[:, :d]).reshape(CH, N)   # gathered by col
    PR = jnp.einsum("ncf,hf->chn", mf, W1[:, d:]).reshape(CH, N)   # gathered by row
    PCR = jnp.concatenate([PC, PR], axis=1)                        # [CH, 2N]
    b1_big = jnp.tile(b1, C).reshape(CH, 1)
    W2_big = jnp.kron(jnp.eye(C, dtype=f32), W2)                   # [C, C*H] block-diagonal
    b2_big = jnp.tile(b2, C).reshape(C, 1)

    # --- Edge tiling -----------------------------------------------------------------------
    # VMEM-driven clamp: the dominant per-lane intermediates are the [2N, tile] f32 one-hot,
    # the [CH, tile] pre/h blocks and the [C, tile] s/e/out blocks.  Keep them under ~12 MiB
    # so we stay well inside scoped VMEM on every generation (v7x has the smallest: 64 MiB
    # physical / 32 MiB scoped).
    bytes_per_lane = 4 * (2 * N + 2 * CH + 3 * C + 8)
    vmem_budget = 12 * 1024 * 1024
    tile_cap = max(128, (vmem_budget // bytes_per_lane) // 128 * 128)
    tile_e = int(min(tile_e, tile_cap))

    n_tiles = max(1, pl.cdiv(E, tile_e))
    # Only force a >=2-step split when each half still has >= 2048 edges: on v7x the
    # 'parallel' axis is shared across its two TensorCores (real win); on v5e/v6e the grid
    # is a serial loop so splitting tiny tiles would just double the per-step overhead.
    if n_tiles < 2 and E >= 4096:
        n_tiles = 2
    tile_e = pl.cdiv(pl.cdiv(E, n_tiles), 128) * 128
    E_pad = n_tiles * tile_e

    pad = E_pad - E
    # Pad with valid node indices (node 0); padded columns are sliced off afterwards.
    col_p = jnp.pad(col, (0, pad))
    row_p = jnp.pad(row, (0, pad))
    idx_p = jnp.stack([col_p, row_p + N], axis=0).astype(jnp.int32)  # [2, E_pad], single stream

    out = pl.pallas_call(
        _edge_net_kernel,
        out_shape=jax.ShapeDtypeStruct((C, E_pad), f32),
        grid_spec=pltpu.PrefetchScalarGridSpec(
            num_scalar_prefetch=0,
            grid=(n_tiles,),
            in_specs=[
                pl.BlockSpec((2, tile_e), lambda i: (0, i)),    # col||(row+N) indices (streamed)
                pl.BlockSpec((CH, 2 * N), lambda i: (0, 0)),    # per-node table (both W1 halves)
                pl.BlockSpec((CH, 1), lambda i: (0, 0)),        # b1 (tiled per class)
                pl.BlockSpec((C, CH), lambda i: (0, 0)),        # block-diagonal W2
                pl.BlockSpec((C, 1), lambda i: (0, 0)),         # b2 (tiled per class)
            ],
            out_specs=pl.BlockSpec((C, tile_e), lambda i: (0, i)),
        ),
        compiler_params=pltpu.CompilerParams(
            dimension_semantics=("parallel",),
            vmem_limit_bytes=32 * 1024 * 1024,
        ),
    )(idx_p, PCR, b1_big, W2_big, b2_big)

    out = out[:, :E]
    if class_major_output:
        return out                                  # [C, E] kernel layout (no extra transpose)
    # [C, E] -> [E, C, 1] (matches the torch module's output layout).
    return out.T.reshape(E, C, 1)


def _reference(m, edge_index, W1, b1, W2, b2):
    row = edge_index[0]
    col = edge_index[1]
    B = jnp.concatenate([m[col], m[row]], axis=-1)                 # [E, C, 2*input_dim]
    h = jnp.tanh(jnp.einsum("ecf,hf->ech", B, W1) + b1)
    s = jnp.tanh(jnp.einsum("ech,oh->eco", h, W2) + b2)
    return jax.nn.softmax(s, axis=1)                               # softmax over classes


if __name__ == "__main__":
    key = jax.random.PRNGKey(0)
    k = jax.random.split(key, 10)

    # Module defaults: input_dim=2, output_dim=8, nclasses=4, stacks=True, edgefeats=False
    input_dim, output_dim, nclasses = 2, 8, 4
    N = 32
    in_size = input_dim * 2  # 4

    # "data.m": per-node, per-class features [N, nclasses, input_dim]
    m = jax.random.normal(k[0], (N, nclasses, input_dim), dtype=jnp.float32)

    # Deterministic parameter init (nn.Linear shapes; uniform(-1/sqrt(fan_in), ...))
    lim1 = 1.0 / jnp.sqrt(float(in_size))
    W1 = jax.random.uniform(k[3], (output_dim, in_size), minval=-lim1, maxval=lim1)
    b1 = jax.random.uniform(k[4], (output_dim,), minval=-lim1, maxval=lim1)
    lim2 = 1.0 / jnp.sqrt(float(output_dim))
    W2 = jax.random.uniform(k[5], (1, output_dim), minval=-lim2, maxval=lim2)
    b2 = jax.random.uniform(k[6], (1,), minval=-lim2, maxval=lim2)

    # --- test 1: small E, single tile -----------------------------------------------------
    E1 = 100
    row1 = jax.random.randint(k[1], (E1,), 0, N)
    col1 = jax.random.randint(k[2], (E1,), 0, N)
    ei1 = jnp.stack([row1, col1], axis=0)

    out1 = multiclass_edge_network_pallas(m, ei1, W1, b1, W2, b2)
    out1 = jax.block_until_ready(out1)
    ref1 = _reference(m, ei1, W1, b1, W2, b2)
    assert out1.shape == (E1, nclasses, 1), out1.shape
    err1 = float(jnp.max(jnp.abs(out1 - ref1)))
    assert err1 < 1e-4, err1

    # --- test 2: multi-tile grid + edge padding -------------------------------------------
    E2 = 300
    row2 = jax.random.randint(k[7], (E2,), 0, N)
    col2 = jax.random.randint(k[8], (E2,), 0, N)
    ei2 = jnp.stack([row2, col2], axis=0)

    out2 = multiclass_edge_network_pallas(m, ei2, W1, b1, W2, b2, tile_e=128)
    out2 = jax.block_until_ready(out2)
    ref2 = _reference(m, ei2, W1, b1, W2, b2)
    assert out2.shape == (E2, nclasses, 1), out2.shape
    err2 = float(jnp.max(jnp.abs(out2 - ref2)))
    assert err2 < 1e-4, err2

    print("KERNEL_OK")
</pallas_src>

<mosaic_0001>
module attributes {stable_mosaic.version = 11 : i64} {
  func.func @_edge_net_kernel(%arg0: i32, %arg1: memref<2x128xi32, #tpu.memory_space<vmem>>, %arg2: memref<32x64xf32, #tpu.memory_space<vmem>>, %arg3: memref<32x1xf32, #tpu.memory_space<vmem>>, %arg4: memref<4x32xf32, #tpu.memory_space<vmem>>, %arg5: memref<4x1xf32, #tpu.memory_space<vmem>>, %arg6: memref<4x128xf32, #tpu.memory_space<vmem>>) attributes {dimension_semantics = [#tpu.dimension_semantics<parallel>], iteration_bounds = array<i64: 1>, scalar_prefetch = 0 : i64, scratch_operands = 0 : i64, tpu.core_type = #tpu.core_type<tc>, window_params = [{transform_indices = @transform_0, window_bounds = array<i64: 2, 128>}, {pipeline_mode = #tpu.pipeline_mode<synchronous>, transform_indices = @transform_1, window_bounds = array<i64: 32, 64>}, {pipeline_mode = #tpu.pipeline_mode<synchronous>, transform_indices = @transform_2, window_bounds = array<i64: 32, 1>}, {pipeline_mode = #tpu.pipeline_mode<synchronous>, transform_indices = @transform_3, window_bounds = array<i64: 4, 32>}, {pipeline_mode = #tpu.pipeline_mode<synchronous>, transform_indices = @transform_4, window_bounds = array<i64: 4, 1>}, {transform_indices = @transform_5, window_bounds = array<i64: 4, 128>}]} {
    %c0 = arith.constant 0 : index
    %c0_0 = arith.constant 0 : index
    %0 = vector.load %arg1[%c0, %c0_0] : memref<2x128xi32, #tpu.memory_space<vmem>>, vector<2x128xi32>
    %1 = tpu.iota {dimensions = array<i32: 0>} : vector<64x128xi32>
    %2 = vector.extract_strided_slice %0 {offsets = [0, 0], sizes = [1, 128], strides = [1, 1]} : vector<2x128xi32> to vector<1x128xi32>
    %3 = vector.broadcast %2 : vector<1x128xi32> to vector<64x128xi32>
    %4 = arith.cmpi eq, %1, %3 : vector<64x128xi32>
    %5 = vector.extract_strided_slice %0 {offsets = [1, 0], sizes = [1, 128], strides = [1, 1]} : vector<2x128xi32> to vector<1x128xi32>
    %6 = vector.broadcast %5 : vector<1x128xi32> to vector<64x128xi32>
    %7 = arith.cmpi eq, %1, %6 : vector<64x128xi32>
    %8 = arith.ori %4, %7 : vector<64x128xi1>
    %9 = arith.extui %8 : vector<64x128xi1> to vector<64x128xi32>
    %10 = arith.sitofp %9 : vector<64x128xi32> to vector<64x128xf32>
    %c0_1 = arith.constant 0 : index
    %c0_2 = arith.constant 0 : index
    %11 = vector.load %arg2[%c0_1, %c0_2] : memref<32x64xf32, #tpu.memory_space<vmem>>, vector<32x64xf32>
    %cst = arith.constant dense<0.000000e+00> : vector<32x128xf32>
    %12 = tpu.matmul %11, %10, %cst {dimension_numbers = #tpu.dot_dimension_numbers<[1], [0], [0], [1], [0, 0, 1, 1], [], []>} : vector<32x64xf32>, vector<64x128xf32>, vector<32x128xf32> -> vector<32x128xf32>
    %c0_3 = arith.constant 0 : index
    %c0_4 = arith.constant 0 : index
    %13 = vector.load %arg3[%c0_3, %c0_4] : memref<32x1xf32, #tpu.memory_space<vmem>>, vector<32x1xf32>
    %14 = vector.broadcast %13 : vector<32x1xf32> to vector<32x128xf32>
    %15 = arith.addf %12, %14 : vector<32x128xf32>
    %16 = math.tanh %15 : vector<32x128xf32>
    %c0_5 = arith.constant 0 : index
    %c0_6 = arith.constant 0 : index
    %17 = vector.load %arg4[%c0_5, %c0_6] : memref<4x32xf32, #tpu.memory_space<vmem>>, vector<4x32xf32>
    %cst_7 = arith.constant dense<0.000000e+00> : vector<4x128xf32>
    %18 = tpu.matmul %17, %16, %cst_7 {dimension_numbers = #tpu.dot_dimension_numbers<[1], [0], [0], [1], [0, 0, 1, 1], [], []>} : vector<4x32xf32>, vector<32x128xf32>, vector<4x128xf32> -> vector<4x128xf32>
    %c0_8 = arith.constant 0 : index
    %c0_9 = arith.constant 0 : index
    %19 = vector.load %arg5[%c0_8, %c0_9] : memref<4x1xf32, #tpu.memory_space<vmem>>, vector<4x1xf32>
    %20 = vector.broadcast %19 : vector<4x1xf32> to vector<4x128xf32>
    %21 = arith.addf %18, %20 : vector<4x128xf32>
    %22 = math.tanh %21 : vector<4x128xf32>
    %23 = math.exp %22 : vector<4x128xf32>
    %cst_10 = arith.constant dense<0.000000e+00> : vector<128xf32>
    %24 = vector.multi_reduction <add>, %23, %cst_10 [0] : vector<4x128xf32> to vector<128xf32>
    %25 = vector.shape_cast %24 : vector<128xf32> to vector<1x128xf32>
    %26 = vector.broadcast %25 : vector<1x128xf32> to vector<4x128xf32>
    %27 = arith.divf %23, %26 : vector<4x128xf32>
    %c0_11 = arith.constant 0 : index
    %c0_12 = arith.constant 0 : index
    %28 = vector.load %arg6[%c0_11, %c0_12] : memref<4x128xf32, #tpu.memory_space<vmem>>, vector<4x128xf32>
    tpu.vector_store %arg6[%c0_11, %c0_12], %27 {strides = array<i32>} : memref<4x128xf32, #tpu.memory_space<vmem>>, vector<4x128xf32>,
    return
  }
  func.func @transform_0(%arg0: i32) -> (i32, i32) {
    %c0_i32 = arith.constant 0 : i32
    %c0_i32_0 = arith.constant 0 : i32
    return %c0_i32, %arg0 : i32, i32
  }
  func.func @transform_1(%arg0: i32) -> (i32, i32) {
    %c0_i32 = arith.constant 0 : i32
    %c0_i32_0 = arith.constant 0 : i32
    %c0_i32_1 = arith.constant 0 : i32
    return %c0_i32, %c0_i32_0 : i32, i32
  }
  func.func @transform_2(%arg0: i32) -> (i32, i32) {
    %c0_i32 = arith.constant 0 : i32
    %c0_i32_0 = arith.constant 0 : i32
    %c0_i32_1 = arith.constant 0 : i32
    return %c0_i32, %c0_i32_0 : i32, i32
  }
  func.func @transform_3(%arg0: i32) -> (i32, i32) {
    %c0_i32 = arith.constant 0 : i32
    %c0_i32_0 = arith.constant 0 : i32
    %c0_i32_1 = arith.constant 0 : i32
    return %c0_i32, %c0_i32_0 : i32, i32
  }
  func.func @transform_4(%arg0: i32) -> (i32, i32) {
    %c0_i32 = arith.constant 0 : i32
    %c0_i32_0 = arith.constant 0 : i32
    %c0_i32_1 = arith.constant 0 : i32
    return %c0_i32, %c0_i32_0 : i32, i32
  }
  func.func @transform_5(%arg0: i32) -> (i32, i32) {
    %c0_i32 = arith.constant 0 : i32
    %c0_i32_0 = arith.constant 0 : i32
    return %c0_i32, %arg0 : i32, i32
  }
}

</mosaic_0001>

<llo_original>
// kernel: tpu_custom_call.1
$region0: #{tpu_custom_call.1}
  #allocation0 [shape = 'u32[]', space=smem, size = 0x4, offset = 0x4, fixed_abs, tag = 'smem constant byte address 0x4 - core index']
  #allocation1 [shape = 'u32[72,128]{1,0:T(1,128)}', space=vmem, size = 0x9000, scoped, tag = 'internal scratch']
  %s0 = inlined_call_operand.hbm [shape: s32[2,128], index: 0, kind: input, shape index: {}]
  %s1 = inlined_call_operand.vmem [shape: f32[32,64], index: 1, kind: input, shape index: {}]
  %s2 = inlined_call_operand.vmem [shape: f32[32,1], index: 2, kind: input, shape index: {}]
  %s3 = inlined_call_operand.vmem [shape: f32[4,32], index: 3, kind: input, shape index: {}]
  %s4 = inlined_call_operand.vmem [shape: f32[4,1], index: 4, kind: input, shape index: {}]
  %s5 = inlined_call_operand.hbm [shape: f32[4,128], index: 5, kind: output, shape index: {}]
  %s6 = sld [smem:[#allocation0]]
  $region34: #{tpu_custom_call.1} parent=0
    _
  %s8 = ssub.s32 1, %s6
  %s9 = scalar_select 0, %s8, %s6
  $region1: #{tpu_custom_call.1} parent=0
    #allocation2 [shape = 'u8[1024]{0}', space=vmem, size = 0x400, scoped, tag = 'input window, operand 0, single buffered']
    #allocation3 [shape = 's32[1]{0}', space=sflag, size = 0x4, scoped, tag = 'scoped memory for tpu_custom_call.1']
    #allocation4 [shape = 's32[1]{0}', space=sflag, size = 0x4, scoped, tag = 'scoped memory for tpu_custom_call.1']
    #allocation5 [shape = 'u8[2048]{0}', space=vmem, size = 0x800, scoped, tag = 'output window, operand 0, single buffered']
    %10 = vsyncpa [#allocation3], 0
    %11 = vsyncpa [#allocation4], 0
    // Predicated region
    $region2: #{tpu_custom_call.1} parent=1 // pred_check
      _
    $region3: #{tpu_custom_call.1} parent=1 // pred_check_branch
      %13 = sbr.rel (0) target = $region5
    $region4: #{tpu_custom_call.1} parent=1 // pred_region
      %15 = vsyncadd [#allocation3], 0
      %s17 = sshll.u32 %s0, 4
      %s18 = int_to_ptr.hbm [resolvable:$true] %s17
      %s19 = sshll.u32 [#allocation2], 4
      %s20 = int_to_ptr.vmem [resolvable:$true] %s19
      %22 = dma.hbm_to_vmem [thread:$0]  %s18, 32, %s20, [#allocation3]
    $region5: #{tpu_custom_call.1} parent=1 // pred_fallthru
      _
    // Predicated region
    $region6: #{tpu_custom_call.1} parent=1 // pred_check
      _
    $region7: #{tpu_custom_call.1} parent=1 // pred_check_branch
      %24 = sbr.rel (0) target = $region9
    $region8: #{tpu_custom_call.1} parent=1 // pred_region
      _
    $region9: #{tpu_custom_call.1} parent=1 // pred_fallthru
      _
    // Predicated region
    $region10: #{tpu_custom_call.1} parent=1 // pred_check
      _
    $region11: #{tpu_custom_call.1} parent=1 // pred_check_branch
      %26 = sbr.rel (0) target = $region13
    $region12: #{tpu_custom_call.1} parent=1 // pred_region
      _
    $region13: #{tpu_custom_call.1} parent=1 // pred_fallthru
      _
    // Predicated region
    $region14: #{tpu_custom_call.1} parent=1 // pred_check
      _
    $region15: #{tpu_custom_call.1} parent=1 // pred_check_branch
      %28 = sbr.rel (0) target = $region17
    $region16: #{tpu_custom_call.1} parent=1 // pred_region
      _
    $region17: #{tpu_custom_call.1} parent=1 // pred_fallthru
      _
    // Predicated region
    $region18: #{tpu_custom_call.1} parent=1 // pred_check
      _
    $region19: #{tpu_custom_call.1} parent=1 // pred_check_branch
      %30 = sbr.rel (0) target = $region21
    $region20: #{tpu_custom_call.1} parent=1 // pred_region
      _
    $region21: #{tpu_custom_call.1} parent=1 // pred_fallthru
      _
    // Predicated region
    $region22: #{tpu_custom_call.1} parent=1 // pred_check
      _
    $region23: #{tpu_custom_call.1} parent=1 // pred_check_branch
      %32 = sbr.rel (0) target = $region25
    $region24: #{tpu_custom_call.1} parent=1 // pred_region
      %34 = dma.done [#allocation3], 32
    $region25: #{tpu_custom_call.1} parent=1 // pred_fallthru
      _
    %v35 = vld [vmem:[#allocation2] sm:$0x3]
    %v36 = vlaneseq
    %v37 = vshrl.u32 %v36, 7
    %v38 = vadd.s32 %v37, 8
    %v39 = vadd.s32 %v37, 16
    %v40 = vadd.s32 %v37, 24
    %v41 = vadd.s32 %v37, 32
    %v42 = vadd.s32 %v37, 40
    %v43 = vadd.s32 %v37, 48
    %v44 = vadd.s32 %v37, 56
    %v45 = vperm.slane %v35, 0
    %vm46 = vcmp.eq.s32.totalorder %v37, %v45
    %vm47 = vcmp.eq.s32.totalorder %v38, %v45
    %vm48 = vcmp.eq.s32.totalorder %v39, %v45
    %vm49 = vcmp.eq.s32.totalorder %v40, %v45
    %vm50 = vcmp.eq.s32.totalorder %v41, %v45
    %vm51 = vcmp.eq.s32.totalorder %v42, %v45
    %vm52 = vcmp.eq.s32.totalorder %v43, %v45
    %vm53 = vcmp.eq.s32.totalorder %v44, %v45
    %v54 = vperm.slane %v35, 1
    %vm55 = vcmp.eq.s32.totalorder %v37, %v54
    %vm56 = vcmp.eq.s32.totalorder %v38, %v54
    %vm57 = vcmp.eq.s32.totalorder %v39, %v54
    %vm58 = vcmp.eq.s32.totalorder %v40, %v54
    %vm59 = vcmp.eq.s32.totalorder %v41, %v54
    %vm60 = vcmp.eq.s32.totalorder %v42, %v54
    %vm61 = vcmp.eq.s32.totalorder %v43, %v54
    %vm62 = vcmp.eq.s32.totalorder %v44, %v54
    %vm63 = vmor %vm46, %vm55
    %vm64 = vmor %vm47, %vm56
    %vm65 = vmor %vm48, %vm57
    %vm66 = vmor %vm49, %vm58
    %vm67 = vmor %vm50, %vm59
    %vm68 = vmor %vm51, %vm60
    %vm69 = vmor %vm52, %vm61
    %vm70 = vmor %vm53, %vm62
    %v71 = vsel %vm63, 1, 0
    %v72 = vsel %vm64, 1, 0
    %v73 = vsel %vm65, 1, 0
    %v74 = vsel %vm66, 1, 0
    %v75 = vsel %vm67, 1, 0
    %v76 = vsel %vm68, 1, 0
    %v77 = vsel %vm69, 1, 0
    %v78 = vsel %vm70, 1, 0
    %v79 = vcvt.s32.f32 %v71
    %v80 = vcvt.s32.f32 %v72
    %v81 = vcvt.s32.f32 %v73
    %v82 = vcvt.s32.f32 %v74
    %v83 = vcvt.s32.f32 %v75
    %v84 = vcvt.s32.f32 %v76
    %v85 = vcvt.s32.f32 %v77
    %v86 = vcvt.s32.f32 %v78
    %v87 = vld [vmem:[%s1] sm:$0xff]
    %v88 = vld [vmem:[%s1 + $0x8] sm:$0xff]
    %v89 = vld [vmem:[%s1 + $0x10] sm:$0xff]
    %v90 = vld [vmem:[%s1 + $0x18] sm:$0xff]
    %v91 = vld [vmem:[%s2] sm:$0xff]
    %v92 = vld [vmem:[%s2 + $0x8] sm:$0xff]
    %v93 = vld [vmem:[%s2 + $0x10] sm:$0xff]
    %v94 = vld [vmem:[%s2 + $0x18] sm:$0xff]
    %96 = vset.pattern.permute.xlu0 0
    %97 = vperm.xlu0 %96, %v91
    %v98 = vpop.permute.xlu0 %97
    %101 = vset.pattern.permute.xlu0 0
    %102 = vperm.xlu0 %101, %v92
    %v103 = vpop.permute.xlu0 %102
    %106 = vset.pattern.permute.xlu0 0
    %107 = vperm.xlu0 %106, %v93
    %v108 = vpop.permute.xlu0 %107
    %111 = vset.pattern.permute.xlu0 0
    %112 = vperm.xlu0 %111, %v94
    %v113 = vpop.permute.xlu0 %112
    %vm115 = vcmask 523264
    %v117 = vsel %vm115, %v87, 0
    %v120 = vsel %vm115, %v88, 0
    %v123 = vsel %vm115, %v89, 0
    %v126 = vsel %vm115, %v90, 0
    %128 = vmatpush.msra.mxu0 0.0
    %129 = vmatpush.msra.mxu0 0.0
    %130 = vmatpush.msra.mxu0 0.0
    %131 = vmatpush.msra.mxu0 0.0
    %132 = vmatpush.msra.mxu0 0.0
    %133 = vmatpush.msra.mxu0 0.0
    %134 = vmatpush.msra.mxu0 0.0
    %135 = vmatpush.msra.mxu0 0.0
    %136 = vmatpush.msra.mxu0 %v86
    %137 = vmatpush.msra.mxu0 %v85
    %138 = vmatpush.msra.mxu0 %v84
    %139 = vmatpush.msra.mxu0 %v83
    %140 = vmatpush.msra.mxu0 %v82
    %141 = vmatpush.msra.mxu0 %v81
    %142 = vmatpush.msra.mxu0 %v80
    %143 = vmatpush.msra.mxu0 %v79
    %144 = vmatmul.f32.gmra.mxu0 %v117
    %v145 = vpop.f32.mrf.mxu0
    %v146 = vadd.f32 %v98, %v145
    %147 = vmatmul.f32.gmra.mxu0 %v120
    %v148 = vpop.f32.mrf.mxu0
    %v149 = vadd.f32 %v103, %v148
    %150 = vmatmul.f32.gmra.mxu0 %v123
    %v151 = vpop.f32.mrf.mxu0
    %v152 = vadd.f32 %v108, %v151
    %153 = vmatmul.f32.gmra.mxu0 %v126
    %v154 = vpop.f32.mrf.mxu0
    %v155 = vadd.f32 %v113, %v154
    %156 = vdwg.mxu0
    %v157 = vtanh.pop %v146
    %v158 = vtanh.pop %v149
    %v159 = vtanh.pop %v152
    %v160 = vtanh.pop %v155
    %v161 = vld [vmem:[%s3] sm:$0xf]
    %v162 = vld [vmem:[%s4] sm:$0xf]
    %164 = vset.pattern.permute.xlu0 0
    %165 = vperm.xlu0 %164, %v162
    %v166 = vpop.permute.xlu0 %165
    %vm168 = vcmask 261120
    %v170 = vsel %vm168, %v161, 0
    %172 = vmatpush.msra.mxu0 0.0
    %173 = vmatpush.msra.mxu0 0.0
    %174 = vmatpush.msra.mxu0 0.0
    %175 = vmatpush.msra.mxu0 0.0
    %176 = vmatpush.msra.mxu0 0.0
    %177 = vmatpush.msra.mxu0 0.0
    %178 = vmatpush.msra.mxu0 0.0
    %179 = vmatpush.msra.mxu0 0.0
    %180 = vmatpush.msra.mxu0 0.0
    %181 = vmatpush.msra.mxu0 0.0
    %182 = vmatpush.msra.mxu0 0.0
    %183 = vmatpush.msra.mxu0 0.0
    %184 = vmatpush.msra.mxu0 %v160
    %185 = vmatpush.msra.mxu0 %v159
    %186 = vmatpush.msra.mxu0 %v158
    %187 = vmatpush.msra.mxu0 %v157
    %188 = vmatmul.f32.gmra.mxu0 %v170
    %v189 = vpop.f32.mrf.mxu0
    %v190 = vadd.f32 %v166, %v189
    %191 = vdwg.mxu0
    %v192 = vtanh.pop %v190
    %v193 = vmul.f32 %v192, 1.442695
    %v194 = vpow.pop %v193
    %vm195 = vcmask 1043456
    %v196 = vsel %vm195, %v194, 0.0
    %v197 = vrot.slane %v196, 4
    %v198 = vadd.f32 %v196, %v197
    %v199 = vrot.slane %v198, 2
    %v200 = vadd.f32 %v198, %v199
    %v201 = vrot.slane %v200, 1
    %v202 = vadd.f32 %v200, %v201
    %v203 = vrcp.pop %v202
    %v204 = vmul.f32 %v202, %v203
    %v205 = vsub.f32 1.0, %v204
    %v206 = vmul.f32 %v203, %v205
    %v207 = vadd.f32 %v203, %v206
    %vm208 = vweird.f32 %v202
    %vm209 = vweird.f32 %v203
    %vm210 = vmor %vm208, %vm209
    %v211 = vsel %vm210, %v203, %v207
    %v212 = vand.u32 2147483647, %v202
    %vm213 = vcmp.eq.f32.partialorder %v212, 8.507059e+37
    %v214 = vand.u32 %v202, 2147483648
    %v215 = vor.u32 1.1754944e-38, %v214
    %v216 = vsel %vm213, %v215, %v211
    %v217 = vmul.f32 %v194, %v216
    %218 = vst [vmem:[#allocation5] sm:$0xf] %v217
    // Predicated region
    $region26: #{tpu_custom_call.1} parent=1 // pred_check
      _
    $region27: #{tpu_custom_call.1} parent=1 // pred_check_branch
      %220 = sbr.rel (0) target = $region29
    $region28: #{tpu_custom_call.1} parent=1 // pred_region
      %222 = vsyncadd [#allocation4], 0
      %s224 = sshll.u32 [#allocation5], 4
      %s225 = int_to_ptr.vmem [resolvable:$true] %s224
      %s226 = sshll.u32 %s5, 4
      %s227 = int_to_ptr.hbm [resolvable:$true] %s226
      %229 = dma.vmem_to_hbm [thread:$0]  %s225, 64, %s227, [#allocation4]
    $region29: #{tpu_custom_call.1} parent=1 // pred_fallthru
      _
    // Predicated region
    $region30: #{tpu_custom_call.1} parent=1 // pred_check
      _
    $region31: #{tpu_custom_call.1} parent=1 // pred_check_branch
      %231 = sbr.rel (0) target = $region33
    $region32: #{tpu_custom_call.1} parent=1 // pred_region
      %233 = dma.done [#allocation4], 64
    $region33: #{tpu_custom_call.1} parent=1 // pred_fallthru
      _
    %234 = vsyncpa [#allocation3], 1
    %235 = vsyncpa [#allocation4], 1

</llo_original>
